<compile_context>
chip_gen: v7x
topology: tpu7x:2x2x1
jax: 0.10.0
libtpu: 0.0.40
codegen_flags: <defaults>
</compile_context>

<pallas_src>
import math

import jax
import jax.numpy as jnp
from jax.experimental import pallas as pl
from jax.experimental.pallas import tpu as pltpu


def _add_pe_kernel(x_ref, pe_ref, o_ref):
    # x_ref / o_ref : (batch_block, rows, lanes) in x.dtype
    # pe_ref        : (rows, lanes) in x.dtype  -> broadcast over batch
    o_ref[...] = x_ref[...] + pe_ref[...][None, :, :]


def _build_pe(seq_len, d_model):
    """The module's __init__-time sinusoidal buffer (exact reference math, f32)."""
    position = jnp.arange(seq_len, dtype=jnp.float32)[:, None]
    div_term = jnp.exp(
        jnp.arange(0, d_model, 2, dtype=jnp.float32) * (-math.log(10000.0) / d_model))
    pe = jnp.zeros((seq_len, d_model), jnp.float32)
    pe = pe.at[:, 0::2].set(jnp.sin(position * div_term))
    pe = pe.at[:, 1::2].set(jnp.cos(position * div_term))
    return pe


def positional_encoding(x):
    """x: (B, S, D) float array. Returns x + sinusoidal PE broadcast over batch."""
    B, S, D = x.shape
    itemsize = jnp.dtype(x.dtype).itemsize
    sub = {1: 32, 2: 16}.get(itemsize, 8)            # dtype-native sublane tile

    # ---- lane-dense layout: fold small D into 128 lanes, or pad D up to k*128 ----
    if D < 128 and 128 % D == 0:
        group, d_pad = 128 // D, D
    else:
        group, d_pad = 1, ((D + 127) // 128) * 128
    s_pad = ((S + group - 1) // group) * group
    lanes = group * d_pad
    s_f = s_pad // group

    x_p = x
    if (s_pad, d_pad) != (S, D):
        x_p = jnp.pad(x, ((0, 0), (0, s_pad - S), (0, d_pad - D)))
    x_f = x_p.reshape(B, s_f, lanes)

    pe = _build_pe(s_pad, D).astype(x.dtype)          # PE kept in the I/O dtype
    if d_pad != D:
        pe = jnp.pad(pe, ((0, 0), (0, d_pad - D)))
    pe_f = pe.reshape(s_f, lanes)

    # ---- tile sizing: byte budget in the I/O dtype ----
    VMEM_BUDGET = 14 * 1024 * 1024   # fits v5e's 16 MiB default scoped VMEM, no bump

    def raw_rows(batch_in_block):
        # double-buffered x-in + x-out + pe blocks resident simultaneously
        return VMEM_BUDGET // (2 * lanes * itemsize * (2 * batch_in_block + 1))

    fold_batch = raw_rows(B) >= sub
    bb = B if fold_batch else 1
    rows = max(sub, (raw_rows(bb) // sub) * sub)
    if rows >= s_f:
        if s_f >= 2 * sub:
            half = -(-s_f // 2)
            rows = -(-half // sub) * sub   # ~half, sublane-aligned -> >=2 seq tiles (v7x)
        else:
            rows = s_f                     # full extent (always a legal block)
    n_seq = pl.cdiv(s_f, rows)             # cdiv grid: no giant-block fallback

    resident = 2 * rows * lanes * itemsize * (2 * bb + 1)
    cp_kwargs = {}
    if resident > VMEM_BUDGET:              # only if even the minimal tile overflows
        cp_kwargs["vmem_limit_bytes"] = int(min(resident + (2 << 20), 48 << 20))

    if fold_batch:
        grid = (n_seq,)
        x_spec = pl.BlockSpec((B, rows, lanes), lambda s: (0, s, 0))
        pe_spec = pl.BlockSpec((rows, lanes), lambda s: (s, 0))
        semantics = ("parallel",)
    else:
        grid = (n_seq, B)                  # batch innermost: PE tile DMA deduped across b
        x_spec = pl.BlockSpec((1, rows, lanes), lambda s, b: (b, s, 0))
        pe_spec = pl.BlockSpec((rows, lanes), lambda s, b: (s, 0))
        semantics = ("parallel", "arbitrary")

    out = pl.pallas_call(
        _add_pe_kernel,
        out_shape=jax.ShapeDtypeStruct((B, s_f, lanes), x.dtype),
        grid=grid,
        in_specs=[x_spec, pe_spec],
        out_specs=x_spec,
        compiler_params=pltpu.CompilerParams(
            dimension_semantics=semantics, **cp_kwargs),
    )(x_f, pe_f)

    out = out.reshape(B, s_pad, d_pad)
    if (s_pad, d_pad) != (S, D):
        out = out[:, :S, :D]
    return out


def _reference(x):
    """Pure-JAX reference mirroring the PyTorch module exactly."""
    B, S, D = x.shape
    return x + _build_pe(S, D)[None].astype(x.dtype)


if __name__ == "__main__":
    key = jax.random.PRNGKey(0)
    k1, k2, k3 = jax.random.split(key, 3)

    # Case 1: small d_model (< 128) exercises the lane-folding path (group = 4).
    x1 = jax.random.normal(k1, (2, 8, 32), dtype=jnp.float32)
    y1 = jax.block_until_ready(positional_encoding(x1))
    assert y1.shape == x1.shape and y1.dtype == x1.dtype
    assert jnp.allclose(y1, _reference(x1), atol=1e-5, rtol=1e-5), "mismatch (folded)"

    # Case 2: lane-aligned d_model exercises the straight (group = 1) path, 2 seq tiles.
    x2 = jax.random.normal(k2, (2, 16, 128), dtype=jnp.float32)
    y2 = jax.block_until_ready(positional_encoding(x2))
    assert jnp.allclose(y2, _reference(x2), atol=1e-5, rtol=1e-5), "mismatch (128)"

    # Case 3: awkward d_model (not a divisor / multiple of 128) exercises lane padding.
    x3 = jax.random.normal(k3, (1, 4, 24), dtype=jnp.float32)
    y3 = jax.block_until_ready(positional_encoding(x3))
    assert jnp.allclose(y3, _reference(x3), atol=1e-5, rtol=1e-5), "mismatch (padded)"

    print("KERNEL_OK")
</pallas_src>

<mosaic_0001>
module attributes {stable_mosaic.version = 11 : i64} {
  func.func @_add_pe_kernel(%arg0: i32, %arg1: memref<2x2x128xf32, #tpu.memory_space<vmem>>, %arg2: memref<2x128xf32, #tpu.memory_space<vmem>>, %arg3: memref<2x2x128xf32, #tpu.memory_space<vmem>>) attributes {dimension_semantics = [#tpu.dimension_semantics<parallel>], iteration_bounds = array<i64: 1>, scalar_prefetch = 0 : i64, scratch_operands = 0 : i64, tpu.core_type = #tpu.core_type<tc>, window_params = [{transform_indices = @transform_0, window_bounds = array<i64: 2, 2, 128>}, {transform_indices = @transform_1, window_bounds = array<i64: 2, 128>}, {transform_indices = @transform_2, window_bounds = array<i64: 2, 2, 128>}]} {
    %c0 = arith.constant 0 : index
    %c0_0 = arith.constant 0 : index
    %c0_1 = arith.constant 0 : index
    %0 = vector.load %arg1[%c0, %c0_0, %c0_1] : memref<2x2x128xf32, #tpu.memory_space<vmem>>, vector<2x2x128xf32>
    %c0_2 = arith.constant 0 : index
    %c0_3 = arith.constant 0 : index
    %1 = vector.load %arg2[%c0_2, %c0_3] : memref<2x128xf32, #tpu.memory_space<vmem>>, vector<2x128xf32>
    %2 = vector.shape_cast %1 : vector<2x128xf32> to vector<1x2x128xf32>
    %3 = vector.broadcast %2 : vector<1x2x128xf32> to vector<2x2x128xf32>
    %4 = arith.addf %0, %3 : vector<2x2x128xf32>
    %c0_4 = arith.constant 0 : index
    %c0_5 = arith.constant 0 : index
    %c0_6 = arith.constant 0 : index
    %5 = vector.load %arg3[%c0_4, %c0_5, %c0_6] : memref<2x2x128xf32, #tpu.memory_space<vmem>>, vector<2x2x128xf32>
    tpu.vector_store %arg3[%c0_4, %c0_5, %c0_6], %4 {strides = array<i32>} : memref<2x2x128xf32, #tpu.memory_space<vmem>>, vector<2x2x128xf32>,
    return
  }
  func.func @transform_0(%arg0: i32) -> (i32, i32, i32) {
    %c0_i32 = arith.constant 0 : i32
    %c0_i32_0 = arith.constant 0 : i32
    %c0_i32_1 = arith.constant 0 : i32
    return %c0_i32, %arg0, %c0_i32_0 : i32, i32, i32
  }
  func.func @transform_1(%arg0: i32) -> (i32, i32) {
    %c0_i32 = arith.constant 0 : i32
    %c0_i32_0 = arith.constant 0 : i32
    return %arg0, %c0_i32 : i32, i32
  }
  func.func @transform_2(%arg0: i32) -> (i32, i32, i32) {
    %c0_i32 = arith.constant 0 : i32
    %c0_i32_0 = arith.constant 0 : i32
    %c0_i32_1 = arith.constant 0 : i32
    return %c0_i32, %arg0, %c0_i32_0 : i32, i32, i32
  }
}

</mosaic_0001>

<llo_original>
// kernel: tpu_custom_call.1
$region0: #{tpu_custom_call.1}
  #allocation0 [shape = 'u32[]', space=smem, size = 0x4, offset = 0x4, fixed_abs, tag = 'smem constant byte address 0x4 - core index']
  #allocation1 [shape = 'u32[144,128]{1,0:T(1,128)}', space=vmem, size = 0x12000, scoped, tag = 'internal scratch']
  %s0 = inlined_call_operand.hbm [shape: f32[2,2,128], index: 0, kind: input, shape index: {}]
  %s1 = inlined_call_operand.vmem [shape: f32[2,128], index: 1, kind: input, shape index: {}]
  %s2 = inlined_call_operand.hbm [shape: f32[2,2,128], index: 2, kind: output, shape index: {}]
  %s3 = sld [smem:[#allocation0]]
  $region22: #{tpu_custom_call.1} parent=0
    _
  %s5 = ssub.s32 1, %s3
  %s6 = scalar_select 0, %s5, %s3
  $region1: #{tpu_custom_call.1} parent=0
    #allocation2 [shape = 'u8[2048]{0}', space=vmem, size = 0x800, scoped, tag = 'input window, operand 0, single buffered']
    #allocation3 [shape = 's32[1]{0}', space=sflag, size = 0x4, scoped, tag = 'scoped memory for tpu_custom_call.1']
    #allocation4 [shape = 's32[1]{0}', space=sflag, size = 0x4, scoped, tag = 'scoped memory for tpu_custom_call.1']
    #allocation5 [shape = 'u8[2048]{0}', space=vmem, size = 0x800, scoped, tag = 'output window, operand 0, single buffered']
    %7 = vsyncpa [#allocation3], 0
    %8 = vsyncpa [#allocation4], 0
    // Predicated region
    $region2: #{tpu_custom_call.1} parent=1 // pred_check
      _
    $region3: #{tpu_custom_call.1} parent=1 // pred_check_branch
      %10 = sbr.rel (0) target = $region5
    $region4: #{tpu_custom_call.1} parent=1 // pred_region
      %s12 = ssub.s32 64, 64
      %13 = vsyncadd [#allocation3], %s12
      %s14 = sshll.u32 [#allocation2], 4
      %s15 = int_to_ptr.vmem [resolvable:$true] %s14
      %20 = dma.hbm_to_vmem [thread:$0]  %s0, 64, %s15, [#allocation3], 32, 32, 2
    $region5: #{tpu_custom_call.1} parent=1 // pred_fallthru
      _
    // Predicated region
    $region6: #{tpu_custom_call.1} parent=1 // pred_check
      _
    $region7: #{tpu_custom_call.1} parent=1 // pred_check_branch
      %22 = sbr.rel (0) target = $region9
    $region8: #{tpu_custom_call.1} parent=1 // pred_region
      _
    $region9: #{tpu_custom_call.1} parent=1 // pred_fallthru
      _
    // Predicated region
    $region10: #{tpu_custom_call.1} parent=1 // pred_check
      _
    $region11: #{tpu_custom_call.1} parent=1 // pred_check_branch
      %24 = sbr.rel (0) target = $region13
    $region12: #{tpu_custom_call.1} parent=1 // pred_region
      %25 = dma.done [#allocation3], 64
    $region13: #{tpu_custom_call.1} parent=1 // pred_fallthru
      _
    %v26 = vld [vmem:[#allocation2] sm:$0x3]
    %v27 = vld [vmem:[#allocation2 + $0x2] sm:$0x3]
    %v28 = vld [vmem:[%s1] sm:$0x3]
    %v29 = vadd.f32 %v26, %v28
    %v30 = vadd.f32 %v27, %v28
    %31 = vst [vmem:[#allocation5] sm:$0x3] %v29
    %32 = vst [vmem:[#allocation5 + $0x2] sm:$0x3] %v30
    // Predicated region
    $region14: #{tpu_custom_call.1} parent=1 // pred_check
      _
    $region15: #{tpu_custom_call.1} parent=1 // pred_check_branch
      %34 = sbr.rel (0) target = $region17
    $region16: #{tpu_custom_call.1} parent=1 // pred_region
      %s36 = ssub.s32 64, 64
      %37 = vsyncadd [#allocation4], %s36
      %s38 = sshll.u32 [#allocation5], 4
      %s39 = int_to_ptr.vmem [resolvable:$true] %s38
      %44 = dma.vmem_to_hbm [thread:$0]  %s39, 64, %s2, [#allocation4], 32, 32, 2
    $region17: #{tpu_custom_call.1} parent=1 // pred_fallthru
      _
    // Predicated region
    $region18: #{tpu_custom_call.1} parent=1 // pred_check
      _
    $region19: #{tpu_custom_call.1} parent=1 // pred_check_branch
      %46 = sbr.rel (0) target = $region21
    $region20: #{tpu_custom_call.1} parent=1 // pred_region
      %47 = dma.done [#allocation4], 64
    $region21: #{tpu_custom_call.1} parent=1 // pred_fallthru
      _
    %48 = vsyncpa [#allocation3], 1
    %49 = vsyncpa [#allocation4], 1

</llo_original>
